<compile_context>
chip_gen: v7x
topology: tpu7x:2x2x1
jax: 0.10.0
libtpu: 0.0.40
codegen_flags: <defaults>
</compile_context>

<pallas_src>
import math

import jax
import jax.numpy as jnp
from jax.experimental import pallas as pl
from jax.experimental.pallas import tpu as pltpu


# --------------------------- tile / VMEM helpers -----------------------------
def _pick_tile(dim, target, multiple):
    """Largest divisor of `dim` that is a multiple of `multiple` and <= target.

    Falls back to the full dim (a full-extent block is always legal)."""
    upper = max(1, min(dim, target))
    for cand in range(upper, 0, -1):
        if dim % cand == 0 and cand % multiple == 0:
            return cand
    return dim


def _vmem_capacity_bytes():
    try:
        cap = getattr(pltpu.get_tpu_info(), "vmem_capacity_bytes", None)
        if cap:
            return int(cap)
    except Exception:
        pass
    return 128 * 1024 * 1024  # v5e / v6e default


def _generation_config():
    """Chip-adaptive tiles + VMEM budget (v7x: 64 MiB/TC, v5e/v6e: 128 MiB)."""
    cap = _vmem_capacity_bytes()
    if cap >= 96 * 1024 * 1024:          # 128 MiB parts (v5e / v6e)
        return dict(vmem_limit=80 * 1024 * 1024,
                    q_tile=256, kv_tile=512, row_tile=1024, col_tile=2048)
    return dict(vmem_limit=40 * 1024 * 1024,   # v7x (64 MiB per TC)
                q_tile=256, kv_tile=256, row_tile=512, col_tile=1024)


# ---------------- kernel 1: row/column tiled linear (x @ W + b) --------------
def _linear_kernel(x_ref, w_ref, b_ref, o_ref):
    # x: (TR, Din) bf16 (resident across the column axis); w: (Din, TC) bf16;
    # b: (1, TC) f32.  One wide lane-dense store per step, f32 accumulation.
    o_ref[...] = (jnp.dot(x_ref[...], w_ref[...],
                          preferred_element_type=jnp.float32)
                  + b_ref[...]).astype(o_ref.dtype)


def _linear(x2d, w, b, *, row_tile, col_tile, out_dtype, vmem_limit):
    rows, din = x2d.shape
    dout = w.shape[1]
    return pl.pallas_call(
        _linear_kernel,
        out_shape=jax.ShapeDtypeStruct((rows, dout), out_dtype),
        grid=(rows // row_tile, dout // col_tile),
        in_specs=[
            pl.BlockSpec((row_tile, din), lambda r, c: (r, 0)),
            pl.BlockSpec((din, col_tile), lambda r, c: (0, c)),
            pl.BlockSpec((1, col_tile), lambda r, c: (0, c)),
        ],
        out_specs=pl.BlockSpec((row_tile, col_tile), lambda r, c: (r, c)),
        compiler_params=pltpu.CompilerParams(
            dimension_semantics=("parallel", "parallel"),
            vmem_limit_bytes=vmem_limit,
        ),
    )(x2d, w, b)


# --------------------- kernel 2: flash attention core ------------------------
def _flash_step(q_ref, k_ref, v_ref, m_sc, l_sc, acc_sc):
    """Online-softmax update for one (q_tile, kv_tile) step.  The 1/sqrt(dh)
    scale is pre-folded into Wq, so no per-step score multiply."""
    @pl.when(pl.program_id(2) == 0)
    def _():
        m_sc[...] = jnp.full(m_sc.shape, -jnp.inf, jnp.float32)
        l_sc[...] = jnp.zeros(l_sc.shape, jnp.float32)
        acc_sc[...] = jnp.zeros(acc_sc.shape, jnp.float32)

    q = q_ref[...]                                     # (H, TQ, Dh) bf16
    k = k_ref[...]                                     # (H, TK, Dh) bf16
    v = v_ref[...]                                     # (H, TK, Dh) bf16

    s = jnp.einsum("hqd,hkd->hqk", q, k,
                   preferred_element_type=jnp.float32)  # (H, TQ, TK) f32

    m_prev = m_sc[...]
    m_new = jnp.maximum(m_prev, jnp.max(s, axis=-1, keepdims=True))
    alpha = jnp.exp(m_prev - m_new)
    p = jnp.exp(s - m_new)
    l_sc[...] = alpha * l_sc[...] + jnp.sum(p, axis=-1, keepdims=True)
    acc_sc[...] = alpha * acc_sc[...] + jnp.einsum(
        "hqk,hkd->hqd", p.astype(v.dtype), v,
        preferred_element_type=jnp.float32)
    m_sc[...] = m_new


def _flash_kernel_fused(q_ref, k_ref, v_ref, wo_ref, bo_ref, o_ref,
                        m_sc, l_sc, acc_sc):
    _flash_step(q_ref, k_ref, v_ref, m_sc, l_sc, acc_sc)

    @pl.when(pl.program_id(2) == pl.num_programs(2) - 1)
    def _():
        attn = acc_sc[...] * pl.reciprocal(l_sc[...], approx=False)  # (H,TQ,Dh)
        # Fused output projection accumulated straight into a (TQ, D) f32
        # buffer: no (H, TQ, D) intermediate is materialized.
        out = None
        for hh in range(wo_ref.shape[0]):
            c = jnp.dot(attn[hh].astype(jnp.bfloat16), wo_ref[hh],
                        preferred_element_type=jnp.float32)          # (TQ, D)
            out = c if out is None else out + c
        o_ref[...] = (out + bo_ref[...]).astype(o_ref.dtype)


def _flash_kernel_plain(q_ref, k_ref, v_ref, o_ref, m_sc, l_sc, acc_sc):
    _flash_step(q_ref, k_ref, v_ref, m_sc, l_sc, acc_sc)

    @pl.when(pl.program_id(2) == pl.num_programs(2) - 1)
    def _():
        o_ref[...] = (acc_sc[...] *
                      pl.reciprocal(l_sc[...], approx=False)).astype(o_ref.dtype)


def _flash_attention(qh, kh, vh, *, wo=None, bo=None, q_tile, kv_tile,
                     out_dtype, vmem_limit):
    b, h, s, dh = qh.shape
    fuse = wo is not None
    grid = (b, s // q_tile, s // kv_tile)

    q_spec = pl.BlockSpec((None, h, q_tile, dh), lambda bi, qi, ki: (bi, 0, qi, 0))
    kv_spec = pl.BlockSpec((None, h, kv_tile, dh), lambda bi, qi, ki: (bi, 0, ki, 0))
    scratch = [
        pltpu.VMEM((h, q_tile, 1), jnp.float32),   # running max
        pltpu.VMEM((h, q_tile, 1), jnp.float32),   # running sum
        pltpu.VMEM((h, q_tile, dh), jnp.float32),  # output accumulator
    ]

    if fuse:
        d = wo.shape[-1]
        kernel = _flash_kernel_fused
        in_specs = [q_spec, kv_spec, kv_spec,
                    pl.BlockSpec((h, dh, d), lambda bi, qi, ki: (0, 0, 0)),
                    pl.BlockSpec((1, d), lambda bi, qi, ki: (0, 0))]
        out_shape = jax.ShapeDtypeStruct((b, s, d), out_dtype)
        out_spec = pl.BlockSpec((None, q_tile, d), lambda bi, qi, ki: (bi, qi, 0))
        args = (qh, kh, vh, wo, bo)
    else:
        kernel = _flash_kernel_plain
        in_specs = [q_spec, kv_spec, kv_spec]
        out_shape = jax.ShapeDtypeStruct((b, h, s, dh), out_dtype)
        out_spec = pl.BlockSpec((None, h, q_tile, dh),
                                lambda bi, qi, ki: (bi, 0, qi, 0))
        args = (qh, kh, vh)

    return pl.pallas_call(
        kernel,
        out_shape=out_shape,
        grid_spec=pltpu.PrefetchScalarGridSpec(
            num_scalar_prefetch=0,
            grid=grid,
            in_specs=in_specs,
            out_specs=out_spec,
            scratch_shapes=scratch,
        ),
        compiler_params=pltpu.CompilerParams(
            dimension_semantics=("parallel", "parallel", "arbitrary"),
            vmem_limit_bytes=vmem_limit,
        ),
    )(*args)


# ------------------------- param prep (done once) ----------------------------
def prepare_mha_params(params, head_n):
    """One-time weight prep: fold 1/sqrt(dh) into Wq/bq, fuse Q/K/V weights,
    cast MXU operands to bf16, pre-reshape Wo per head."""
    d = params["wq"].shape[0]
    dh = d // head_n
    scale = 1.0 / math.sqrt(dh)
    wqkv = jnp.concatenate(
        [params["wq"] * scale, params["wk"], params["wv"]],
        axis=1).astype(jnp.bfloat16)                        # (D, 3D)
    bqkv = jnp.concatenate(
        [params["bq"] * scale, params["bk"], params["bv"]],
        axis=1).astype(jnp.float32)                         # (1, 3D)
    return dict(
        wqkv=wqkv,
        bqkv=bqkv,
        wo_heads=params["wo"].reshape(head_n, dh, d).astype(jnp.bfloat16),
        wo=params["wo"].astype(jnp.bfloat16),
        bo=params["bo"].astype(jnp.float32),
    )


# --------------------------------- wrapper -----------------------------------
def multi_headed_attention(x, prepped, head_n):
    """Self-attention forward of MultiHeadedAttention (mask=None, eval mode)."""
    b, s, d = x.shape
    assert d % head_n == 0
    dh = d // head_n

    cfg = _generation_config()
    vmem_limit = cfg["vmem_limit"]

    # ---- fused QKV projection (kernel 1) ----
    x2d = x.reshape(b * s, d).astype(jnp.bfloat16)      # one-time wrapper cast
    tr = _pick_tile(b * s, cfg["row_tile"], 8)
    tc = _pick_tile(3 * d, cfg["col_tile"], 128)
    qkv2d = _linear(x2d, prepped["wqkv"], prepped["bqkv"],
                    row_tile=tr, col_tile=tc,
                    out_dtype=jnp.bfloat16, vmem_limit=vmem_limit)

    # Wrapper-side layout plumbing (cheap XLA copies): (rows,3D)->(3,B,H,S,Dh).
    qkv = qkv2d.reshape(b, s, 3, head_n, dh).transpose(2, 0, 3, 1, 4)
    qh, kh, vh = qkv[0], qkv[1], qkv[2]

    # ---- flash attention (+ optionally fused output projection) ----
    tq = _pick_tile(s, cfg["q_tile"], 8)
    tk = _pick_tile(s, cfg["kv_tile"], 8)
    # Gate W_o fusion on the resident weight fitting comfortably in the budget
    # alongside K/V double buffers, scores, and accumulators.
    fuse_wo = 2 * d * d <= vmem_limit // 6

    if fuse_wo:
        return _flash_attention(
            qh, kh, vh, wo=prepped["wo_heads"], bo=prepped["bo"],
            q_tile=tq, kv_tile=tk, out_dtype=x.dtype, vmem_limit=vmem_limit)

    # Fallback (large D on 64 MiB parts): raw per-head output, then a separate
    # lane-dense linear kernel for W_o.
    attn = _flash_attention(qh, kh, vh, q_tile=tq, kv_tile=tk,
                            out_dtype=jnp.bfloat16, vmem_limit=vmem_limit)
    attn2d = attn.transpose(0, 2, 1, 3).reshape(b * s, d)
    tc_o = _pick_tile(d, cfg["col_tile"], 128)
    out2d = _linear(attn2d, prepped["wo"], prepped["bo"],
                    row_tile=tr, col_tile=tc_o,
                    out_dtype=x.dtype, vmem_limit=vmem_limit)
    return out2d.reshape(b, s, d)


# -------------------------- deterministic params ------------------------------
def init_mha_params(key, dim_word):
    ks = jax.random.split(key, 8)

    def w(k, shape):
        return jax.random.normal(k, shape, jnp.float32) * 0.02

    # Weights stored (in_features, out_features): y = x @ W + b (== torch Linear
    # with W_torch = W.T).
    return dict(
        wq=w(ks[0], (dim_word, dim_word)), bq=w(ks[1], (1, dim_word)),
        wk=w(ks[2], (dim_word, dim_word)), bk=w(ks[3], (1, dim_word)),
        wv=w(ks[4], (dim_word, dim_word)), bv=w(ks[5], (1, dim_word)),
        wo=w(ks[6], (dim_word, dim_word)), bo=w(ks[7], (1, dim_word)),
    )


# ----------------------------- pure JAX reference -----------------------------
def _ref_mha(x, p, head_n):
    b, s, d = x.shape
    dh = d // head_n
    q = x @ p["wq"] + p["bq"]
    k = x @ p["wk"] + p["bk"]
    v = x @ p["wv"] + p["bv"]

    def split(t):
        return t.reshape(b, s, head_n, dh).transpose(0, 2, 1, 3)

    qh, kh, vh = split(q), split(k), split(v)
    sc = jnp.einsum("bhqd,bhkd->bhqk", qh, kh) / math.sqrt(dh)
    pa = jax.nn.softmax(sc, axis=-1)
    o = jnp.einsum("bhqk,bhkd->bhqd", pa, vh).transpose(0, 2, 1, 3).reshape(b, s, d)
    return o @ p["wo"] + p["bo"]


if __name__ == "__main__":
    BATCH, SEQ, DIM_WORD, HEAD_N = 2, 8, 32, 4

    key = jax.random.PRNGKey(0)
    kx, kp = jax.random.split(key)
    x = jax.random.normal(kx, (BATCH, SEQ, DIM_WORD), jnp.float32)
    params = init_mha_params(kp, DIM_WORD)
    prepped = prepare_mha_params(params, HEAD_N)   # hoisted one-time weight prep

    out = multi_headed_attention(x, prepped, HEAD_N)
    out = jax.block_until_ready(out)

    ref = _ref_mha(x, params, HEAD_N)
    assert out.shape == (BATCH, SEQ, DIM_WORD)
    # bf16 MXU operands -> slightly looser tolerance than pure f32.
    assert jnp.allclose(out, ref, rtol=2e-2, atol=2e-2), "mismatch vs reference"

    print("KERNEL_OK")
</pallas_src>

<mosaic_0001>
module attributes {stable_mosaic.version = 11 : i64} {
  func.func @_linear_kernel(%arg0: i32, %arg1: i32, %arg2: memref<16x32xbf16, #tpu.memory_space<vmem>>, %arg3: memref<32x96xbf16, #tpu.memory_space<vmem>>, %arg4: memref<1x96xf32, #tpu.memory_space<vmem>>, %arg5: memref<16x96xbf16, #tpu.memory_space<vmem>>) attributes {dimension_semantics = [#tpu.dimension_semantics<parallel>, #tpu.dimension_semantics<parallel>], iteration_bounds = array<i64: 1, 1>, scalar_prefetch = 0 : i64, scratch_operands = 0 : i64, tpu.core_type = #tpu.core_type<tc>, window_params = [{transform_indices = @transform_0, window_bounds = array<i64: 16, 32>}, {transform_indices = @transform_1, window_bounds = array<i64: 32, 96>}, {transform_indices = @transform_2, window_bounds = array<i64: 1, 96>}, {transform_indices = @transform_3, window_bounds = array<i64: 16, 96>}]} {
    %c0 = arith.constant 0 : index
    %c0_0 = arith.constant 0 : index
    %0 = vector.load %arg2[%c0, %c0_0] : memref<16x32xbf16, #tpu.memory_space<vmem>>, vector<16x32xbf16>
    %c0_1 = arith.constant 0 : index
    %c0_2 = arith.constant 0 : index
    %1 = vector.load %arg3[%c0_1, %c0_2] : memref<32x96xbf16, #tpu.memory_space<vmem>>, vector<32x96xbf16>
    %cst = arith.constant dense<0.000000e+00> : vector<16x96xf32>
    %2 = tpu.matmul %0, %1, %cst {dimension_numbers = #tpu.dot_dimension_numbers<[1], [0], [0], [1], [0, 0, 1, 1], [], []>} : vector<16x32xbf16>, vector<32x96xbf16>, vector<16x96xf32> -> vector<16x96xf32>
    %c0_3 = arith.constant 0 : index
    %c0_4 = arith.constant 0 : index
    %3 = vector.load %arg4[%c0_3, %c0_4] : memref<1x96xf32, #tpu.memory_space<vmem>>, vector<1x96xf32>
    %4 = vector.broadcast %3 : vector<1x96xf32> to vector<16x96xf32>
    %5 = arith.addf %2, %4 : vector<16x96xf32>
    %6 = arith.truncf %5 : vector<16x96xf32> to vector<16x96xbf16>
    %c0_5 = arith.constant 0 : index
    %c0_6 = arith.constant 0 : index
    %7 = vector.load %arg5[%c0_5, %c0_6] : memref<16x96xbf16, #tpu.memory_space<vmem>>, vector<16x96xbf16>
    tpu.vector_store %arg5[%c0_5, %c0_6], %6 {strides = array<i32>} : memref<16x96xbf16, #tpu.memory_space<vmem>>, vector<16x96xbf16>,
    return
  }
  func.func @transform_0(%arg0: i32, %arg1: i32) -> (i32, i32) {
    %c0_i32 = arith.constant 0 : i32
    %c0_i32_0 = arith.constant 0 : i32
    return %arg0, %c0_i32 : i32, i32
  }
  func.func @transform_1(%arg0: i32, %arg1: i32) -> (i32, i32) {
    %c0_i32 = arith.constant 0 : i32
    %c0_i32_0 = arith.constant 0 : i32
    return %c0_i32, %arg1 : i32, i32
  }
  func.func @transform_2(%arg0: i32, %arg1: i32) -> (i32, i32) {
    %c0_i32 = arith.constant 0 : i32
    %c0_i32_0 = arith.constant 0 : i32
    return %c0_i32, %arg1 : i32, i32
  }
  func.func @transform_3(%arg0: i32, %arg1: i32) -> (i32, i32) {
    %c0_i32 = arith.constant 0 : i32
    return %arg0, %arg1 : i32, i32
  }
}

</mosaic_0001>

<llo_original>
// kernel: tpu_custom_call.1
$region0: #{tpu_custom_call.1}
  #allocation0 [shape = 'u32[]', space=smem, size = 0x4, offset = 0x4, fixed_abs, tag = 'smem constant byte address 0x4 - core index']
  #allocation1 [shape = 'u32[144,128]{1,0:T(1,128)}', space=vmem, size = 0x12000, scoped, tag = 'internal scratch']
  %s0 = inlined_call_operand.hbm [shape: bf16[16,32], index: 0, kind: input, shape index: {}]
  %s1 = inlined_call_operand.hbm [shape: bf16[32,96], index: 1, kind: input, shape index: {}]
  %s2 = inlined_call_operand.hbm [shape: f32[1,96], index: 2, kind: input, shape index: {}]
  %s3 = inlined_call_operand.hbm [shape: bf16[16,96], index: 3, kind: output, shape index: {}]
  %s4 = sld [smem:[#allocation0]]
  $region34: #{tpu_custom_call.1} parent=0
    _
  %s6 = ssub.s32 1, %s4
  %s7 = scalar_select 0, %s6, %s4
  $region1: #{tpu_custom_call.1} parent=0
    #allocation2 [shape = 'u8[4096]{0}', space=vmem, size = 0x1000, scoped, tag = 'input window, operand 0, single buffered']
    #allocation3 [shape = 's32[1]{0}', space=sflag, size = 0x4, scoped, tag = 'scoped memory for tpu_custom_call.1']
    #allocation4 [shape = 's32[1]{0}', space=sflag, size = 0x4, scoped, tag = 'scoped memory for tpu_custom_call.1']
    #allocation5 [shape = 'u8[8192]{0}', space=vmem, size = 0x2000, scoped, tag = 'input window, operand 1, single buffered']
    #allocation6 [shape = 's32[1]{0}', space=sflag, size = 0x4, scoped, tag = 'scoped memory for tpu_custom_call.1']
    #allocation7 [shape = 'u8[512]{0}', space=vmem, size = 0x400, scoped, tag = 'input window, operand 2, single buffered']
    #allocation8 [shape = 'u8[4096]{0}', space=vmem, size = 0x1000, scoped, tag = 'output window, operand 0, single buffered']
    %8 = vsyncpa [#allocation3], 0
    %9 = vsyncpa [#allocation6], 0
    %10 = vsyncpa [#allocation4], 0
    // Predicated region
    $region2: #{tpu_custom_call.1} parent=1 // pred_check
      _
    $region3: #{tpu_custom_call.1} parent=1 // pred_check_branch
      %12 = sbr.rel (0) target = $region5
    $region4: #{tpu_custom_call.1} parent=1 // pred_region
      %s14 = ssub.s32 128, 128
      %15 = vsyncadd [#allocation3], %s14
      %s16 = sshll.u32 [#allocation2], 4
      %s17 = int_to_ptr.vmem [resolvable:$true] %s16
      %22 = dma.hbm_to_vmem [thread:$0]  %s0, 128, %s17, [#allocation3], 64, 64, 4
    $region5: #{tpu_custom_call.1} parent=1 // pred_fallthru
      _
    // Predicated region
    $region6: #{tpu_custom_call.1} parent=1 // pred_check
      _
    $region7: #{tpu_custom_call.1} parent=1 // pred_check_branch
      %24 = sbr.rel (0) target = $region9
    $region8: #{tpu_custom_call.1} parent=1 // pred_region
      %s26 = ssub.s32 256, 256
      %27 = vsyncadd [#allocation6], %s26
      %s28 = sshll.u32 [#allocation5], 4
      %s29 = int_to_ptr.vmem [resolvable:$true] %s28
      %34 = dma.hbm_to_vmem [thread:$0]  %s1, 256, %s29, [#allocation6], 64, 64, 4
    $region9: #{tpu_custom_call.1} parent=1 // pred_fallthru
      _
    // Predicated region
    $region10: #{tpu_custom_call.1} parent=1 // pred_check
      _
    $region11: #{tpu_custom_call.1} parent=1 // pred_check_branch
      %36 = sbr.rel (0) target = $region13
    $region12: #{tpu_custom_call.1} parent=1 // pred_region
      %s38 = ssub.s32 16, 16
      %39 = vsyncadd [#allocation6], %s38
      %s41 = sshll.u32 [#allocation7], 4
      %s42 = int_to_ptr.vmem [resolvable:$true] %s41
      %44 = dma.hbm_to_vmem [thread:$0]  %s2, 16, %s42, [#allocation6]
    $region13: #{tpu_custom_call.1} parent=1 // pred_fallthru
      _
    // Predicated region
    $region14: #{tpu_custom_call.1} parent=1 // pred_check
      _
    $region15: #{tpu_custom_call.1} parent=1 // pred_check_branch
      %46 = sbr.rel (0) target = $region17
    $region16: #{tpu_custom_call.1} parent=1 // pred_region
      %47 = dma.done [#allocation3], 128
    $region17: #{tpu_custom_call.1} parent=1 // pred_fallthru
      _
    // Predicated region
    $region18: #{tpu_custom_call.1} parent=1 // pred_check
      _
    $region19: #{tpu_custom_call.1} parent=1 // pred_check_branch
      %49 = sbr.rel (0) target = $region21
    $region20: #{tpu_custom_call.1} parent=1 // pred_region
      %50 = dma.done [#allocation6], 256
    $region21: #{tpu_custom_call.1} parent=1 // pred_fallthru
      _
    // Predicated region
    $region22: #{tpu_custom_call.1} parent=1 // pred_check
      _
    $region23: #{tpu_custom_call.1} parent=1 // pred_check_branch
      %52 = sbr.rel (0) target = $region25
    $region24: #{tpu_custom_call.1} parent=1 // pred_region
      %53 = dma.done [#allocation6], 16
    $region25: #{tpu_custom_call.1} parent=1 // pred_fallthru
      _
    %v55 = vld [vmem:[#allocation2] sm:$0xf]
    %v56 = vld [vmem:[#allocation2 + $0x4] sm:$0xf]
    %v57 = vld [vmem:[#allocation5] sm:$0xf]
    %v58 = vld [vmem:[#allocation5 + $0x4] sm:$0xf]
    %v59 = vld [vmem:[#allocation5 + $0x8] sm:$0xf]
    %v60 = vld [vmem:[#allocation5 + $0xc] sm:$0xf]
    %v61 = vld [vmem:[#allocation7] sm:$0x1]
    %v63 = vlaneseq
    %v64 = vshrl.u32 %v63, 7
    %v65 = vsub.s32 0, %v64
    %v66 = vrot.slane %v61, %v65
    %v70 = vunpack.c.l.b16 %v55
    %v71 = vunpack.c.l.b16 %v56
    %v72 = vpack.c.b16 %v71, %v70
    %v77 = vunpack.c.l.b16 %v57
    %v78 = vunpack.c.l.b16 %v58
    %v79 = vunpack.c.l.b16 %v59
    %v80 = vunpack.c.l.b16 %v60
    %v81 = vpack.c.b16 %v78, %v77
    %v82 = vpack.c.b16 %v80, %v79
    %vm85 = vcmask 261120
    %v87 = vsel %vm85, %v72, 0
    %89 = vmatprep.subr.bf16.mxu0 0
    %90 = vmatpush1.bf16.msra.mxu0 %v81
    %91 = vmatprep.subr.bf16.mxu0 0
    %92 = vmatpush1.bf16.msra.mxu0 %v82
    %93 = vmatprep.subr.bf16.mxu0 0
    %94 = vmatpush1.bf16.msra.mxu0 0
    %95 = vmatprep.subr.bf16.mxu0 0
    %96 = vmatpush1.bf16.msra.mxu0 0
    %97 = vmatprep.subr.bf16.mxu0 0
    %98 = vmatpush1.bf16.msra.mxu0 0
    %99 = vmatprep.subr.bf16.mxu0 0
    %100 = vmatpush1.bf16.msra.mxu0 0
    %101 = vmatprep.subr.bf16.mxu0 0
    %102 = vmatpush1.bf16.msra.mxu0 0
    %103 = vmatprep.subr.bf16.mxu0 0
    %104 = vmatpush1.bf16.msra.mxu0 0
    %105 = vmatprep.subr.bf16.mxu0 0
    %106 = vmatpush1.bf16.msra.mxu0 0
    %107 = vmatprep.subr.bf16.mxu0 0
    %108 = vmatpush1.bf16.msra.mxu0 0
    %109 = vmatprep.subr.bf16.mxu0 0
    %110 = vmatpush1.bf16.msra.mxu0 0
    %111 = vmatprep.subr.bf16.mxu0 0
    %112 = vmatpush1.bf16.msra.mxu0 0
    %113 = vmatprep.subr.bf16.mxu0 0
    %114 = vmatpush1.bf16.msra.mxu0 0
    %115 = vmatprep.subr.bf16.mxu0 0
    %116 = vmatpush1.bf16.msra.mxu0 0
    %117 = vmatprep.subr.bf16.mxu0 0
    %118 = vmatpush1.bf16.msra.mxu0 0
    %119 = vmatprep.subr.bf16.mxu0 0
    %120 = vmatpush1.bf16.msra.mxu0 0
    %121 = vmatprep.mubr.bf16.mxu0 0
    %122 = vmatmul.mubr.bf16.gmra.mrb[0].mxu0 %v87
    %v123 = vpop.f32.mrb[0].mxu0
    %v124 = vadd.f32 %v66, %v123
    %v125 = vpop.f32.mrb[0].mxu0
    %v126 = vpop.f32.mrb[0].mxu0
    %v127 = vadd.f32 %v66, %v126
    %v128 = vpop.f32.mrb[0].mxu0
    %129 = vdwg.mxu0
    %v130 = vpack.c.bf16 %v127, %v124
    %v132 = vunpack.c.l.b16 %v130
    %v133 = vunpack.c.h.b16 %v130
    %v134 = vpack.c.b16 %v132, %v132
    %v135 = vpack.c.b16 %v133, %v133
    %vm138 = vcmask 781312
    %139 = vst.msk [vmem:[#allocation8] sm:$0xf] %vm138, %v134
    %140 = vst.msk [vmem:[#allocation8 + $0x4] sm:$0xf] %vm138, %v135
    // Predicated region
    $region26: #{tpu_custom_call.1} parent=1 // pred_check
      _
    $region27: #{tpu_custom_call.1} parent=1 // pred_check_branch
      %142 = sbr.rel (0) target = $region29
    $region28: #{tpu_custom_call.1} parent=1 // pred_region
      %s144 = ssub.s32 128, 128
      %145 = vsyncadd [#allocation4], %s144
      %s146 = sshll.u32 [#allocation8], 4
      %s147 = int_to_ptr.vmem [resolvable:$true] %s146
      %152 = dma.vmem_to_hbm [thread:$0]  %s147, 128, %s3, [#allocation4], 64, 64, 4
    $region29: #{tpu_custom_call.1} parent=1 // pred_fallthru
      _
    // Predicated region
    $region30: #{tpu_custom_call.1} parent=1 // pred_check
      _
    $region31: #{tpu_custom_call.1} parent=1 // pred_check_branch
      %154 = sbr.rel (0) target = $region33
    $region32: #{tpu_custom_call.1} parent=1 // pred_region
      %155 = dma.done [#allocation4], 128
    $region33: #{tpu_custom_call.1} parent=1 // pred_fallthru
      _
    %156 = vsyncpa [#allocation3], 1
    %157 = vsyncpa [#allocation6], 1
    %158 = vsyncpa [#allocation4], 1

</llo_original>
